<compile_context>
chip_gen: v6e
topology: v6e:2x2x1
jax: 0.10.0
libtpu: 0.0.40
codegen_flags: <defaults>
</compile_context>

<pallas_src>
import functools

import jax
import jax.numpy as jnp
from jax.experimental import pallas as pl
from jax.experimental.pallas import tpu as pltpu


def _round_up(x: int, m: int) -> int:
    return ((x + m - 1) // m) * m


def _dtype_bytes(dt) -> int:
    return jnp.dtype(dt).itemsize


def _physical_vmem_bytes() -> int:
    """Per-core VMEM capacity; conservative 64 MiB (v7x) fallback."""
    try:
        info = pltpu.get_tpu_info()
        v = getattr(info, "vmem_capacity_bytes", None)
        if v:
            return int(v)
    except Exception:
        pass
    return 64 * 1024 * 1024


def _pick_tm(batch: int):
    """Pick batch tile TM and padded batch BP.

    Goals: >=2 batch tiles when batch > 128 (v7x megacore), TM up to 512 for large
    batches (amortize weight streaming, esp. v5e), padding waste capped ~12.5%.
    """
    bp8 = _round_up(batch, 8)
    if bp8 <= 128:
        return bp8, bp8
    for tm in (512, 256, 128, 64, 32, 16, 8):
        bp = _round_up(bp8, tm)
        if bp // tm >= 2 and (bp - batch) <= max(batch // 8, 8):
            return tm, bp
    return 128, _round_up(bp8, 128)


def _vmem_footprint(tm, th, ip, x_dt, w_dt, b_dt, enc_dt, dec_dt, use_acc) -> int:
    """Rough VMEM bytes for one grid step (BlockSpec double-buffers every operand)."""
    b = 0
    b += 2 * tm * ip * _dtype_bytes(x_dt)      # x tile
    b += 2 * ip * th * _dtype_bytes(w_dt)      # W_enc tile
    b += 2 * th * ip * _dtype_bytes(w_dt)      # W_dec tile
    b += 2 * 8 * th * _dtype_bytes(b_dt)       # b_enc tile (sublane-padded)
    b += 2 * 8 * ip * _dtype_bytes(b_dt)       # b_dec tile
    b += 2 * tm * th * _dtype_bytes(enc_dt)    # encoded out tile
    b += 2 * tm * ip * _dtype_bytes(dec_dt)    # decoded out tile
    if use_acc:
        b += tm * ip * 4                       # f32 accumulator scratch
    return b


def _sae_kernel(x_ref, we_ref, be_ref, wd_ref, bd_ref, enc_ref, dec_ref,
                *scratch, use_acc):
    h = pl.program_id(1)
    last = pl.num_programs(1) - 1

    # encoded tile = x @ We[:, h_tile] + be[h_tile]   (f32 accumulation on MXU)
    enc_f32 = (
        jnp.dot(x_ref[...], we_ref[...], preferred_element_type=jnp.float32)
        + be_ref[...]
    )
    enc_cast = enc_f32.astype(enc_ref.dtype)
    enc_ref[...] = enc_cast

    # Decoder matmul operand: cast exactly once (reuse the stored cast when it
    # already matches the decoder weight dtype; no-op when everything is f32).
    dec_in = enc_cast if enc_ref.dtype == wd_ref.dtype else enc_f32.astype(wd_ref.dtype)
    contrib = jnp.dot(dec_in, wd_ref[...], preferred_element_type=jnp.float32)

    if use_acc:
        # Low-precision output: keep an f32 scratch accumulator, finalize once.
        acc_ref, = scratch

        @pl.when(h == 0)
        def _():
            acc_ref[...] = jnp.zeros_like(acc_ref)

        acc_ref[...] += contrib

        @pl.when(h == last)
        def _():
            dec_ref[...] = (acc_ref[...] + bd_ref[...]).astype(dec_ref.dtype)
    else:
        # f32 output: accumulate directly into the resident decoded tile
        # (saves TM*IP*4 bytes of VMEM and the finalize copy).
        @pl.when(h == 0)
        def _():
            dec_ref[...] = bd_ref[...] + contrib

        @pl.when(h != 0)
        def _():
            dec_ref[...] += contrib


def prepare_sae_params(w_enc, b_enc, w_dec, b_dec):
    """Pad SAE parameters to lane-aligned shapes ONCE (hoisted out of the hot path).

    w_enc: (in, hidden), b_enc: (hidden,) or (1, hidden),
    w_dec: (hidden, in), b_dec: (in,) or (1, in).
    (PyTorch nn.Linear stores weight as (out, in); pass the transposed layout so the
    kernel runs plain row-major matmuls on the MXU.)
    """
    in_f, hidden = w_enc.shape
    IP = _round_up(in_f, 128)
    HP = _round_up(hidden, 128)
    b_enc = jnp.reshape(b_enc, (1, hidden))
    b_dec = jnp.reshape(b_dec, (1, in_f))

    def pad2(a, rows, cols):
        pr, pc = rows - a.shape[0], cols - a.shape[1]
        if pr == 0 and pc == 0:
            return a  # already aligned -> no copy
        return jnp.pad(a, ((0, pr), (0, pc)))

    return {
        "we": pad2(w_enc, IP, HP),
        "be": pad2(b_enc, 1, HP),
        "wd": pad2(w_dec, HP, IP),
        "bd": pad2(b_dec, 1, IP),
        "in_features": in_f,
        "hidden_features": hidden,
    }


def sae_forward(x, params, *, enc_dtype=None, max_hidden_tile=2048):
    """x: (B, in_features). params: output of prepare_sae_params.
    Returns (encoded (B, hidden), decoded (B, in_features))."""
    B, in_f = x.shape
    assert in_f == params["in_features"]
    hidden = params["hidden_features"]
    we_p, be_p, wd_p, bd_p = params["we"], params["be"], params["wd"], params["bd"]
    IP, HP = we_p.shape
    x_dtype = x.dtype
    dec_dtype = x_dtype
    enc_dtype = jnp.dtype(enc_dtype) if enc_dtype is not None else jnp.dtype(x_dtype)
    w_dtype = we_p.dtype
    b_dtype = be_p.dtype
    use_acc = jnp.dtype(dec_dtype) != jnp.dtype(jnp.float32)

    # ---- tile selection under a VMEM budget -----------------------------------
    phys_vmem = _physical_vmem_bytes()
    budget = int(phys_vmem * 0.6)

    TM, BP = _pick_tm(B)
    max_th = max(128, min(int(max_hidden_tile), HP))
    th_cands = [t for t in range(128, max_th + 1, 128) if HP % t == 0]  # 128 always divides

    TH = None
    while True:
        fitting = [t for t in th_cands
                   if _vmem_footprint(TM, t, IP, x_dtype, w_dtype, b_dtype,
                                      enc_dtype, dec_dtype, use_acc) <= budget]
        if fitting:
            TH = max(fitting)
            break
        if TM > 8:
            TM = max(8, (TM // 2) // 8 * 8)
            BP = _round_up(B, TM)
        else:
            TH = 128  # TODO(synk): tile the IP axis for very wide in_features
            break

    footprint = _vmem_footprint(TM, TH, IP, x_dtype, w_dtype, b_dtype,
                                enc_dtype, dec_dtype, use_acc)
    vmem_limit = int(min(phys_vmem, max(32 << 20, footprint + (16 << 20))))

    # ---- per-call padding of x only (weights were pre-padded once) -------------
    if BP != B or IP != in_f:
        x_p = jnp.pad(x, ((0, BP - B), (0, IP - in_f)))
    else:
        x_p = x

    grid = (BP // TM, HP // TH)

    out_shapes = (
        jax.ShapeDtypeStruct((BP, HP), enc_dtype),   # encoded (padded)
        jax.ShapeDtypeStruct((BP, IP), dec_dtype),   # decoded (padded)
    )
    scratch_shapes = [pltpu.VMEM((TM, IP), jnp.float32)] if use_acc else []

    enc_p, dec_p = pl.pallas_call(
        functools.partial(_sae_kernel, use_acc=use_acc),
        out_shape=out_shapes,
        grid=grid,
        in_specs=[
            pl.BlockSpec((TM, IP), lambda m, h: (m, 0)),   # x: resident across hidden
            pl.BlockSpec((IP, TH), lambda m, h: (0, h)),   # We column tile
            pl.BlockSpec((1, TH), lambda m, h: (0, h)),    # be tile
            pl.BlockSpec((TH, IP), lambda m, h: (h, 0)),   # Wd row tile
            pl.BlockSpec((1, IP), lambda m, h: (0, 0)),    # bd (resident)
        ],
        out_specs=[
            pl.BlockSpec((TM, TH), lambda m, h: (m, h)),   # encoded tile
            pl.BlockSpec((TM, IP), lambda m, h: (m, 0)),   # decoded (accumulated)
        ],
        scratch_shapes=scratch_shapes,
        compiler_params=pltpu.CompilerParams(
            dimension_semantics=("parallel", "arbitrary"),
            vmem_limit_bytes=vmem_limit,
        ),
    )(x_p, we_p, be_p, wd_p, bd_p)

    return enc_p[:B, :hidden], dec_p[:B, :in_f]


def _init_params(key, in_features, hidden_features, dtype=jnp.float32):
    """nn.Linear-style uniform(-1/sqrt(fan_in), 1/sqrt(fan_in)) init."""
    k_we, k_be, k_wd, k_bd = jax.random.split(key, 4)
    be_bound = 1.0 / (in_features ** 0.5)
    bd_bound = 1.0 / (hidden_features ** 0.5)
    w_enc = jax.random.uniform(k_we, (in_features, hidden_features),
                               jnp.float32, -be_bound, be_bound).astype(dtype)
    b_enc = jax.random.uniform(k_be, (1, hidden_features),
                               jnp.float32, -be_bound, be_bound).astype(dtype)
    w_dec = jax.random.uniform(k_wd, (hidden_features, in_features),
                               jnp.float32, -bd_bound, bd_bound).astype(dtype)
    b_dec = jax.random.uniform(k_bd, (1, in_features),
                               jnp.float32, -bd_bound, bd_bound).astype(dtype)
    return w_enc, b_enc, w_dec, b_dec


if __name__ == "__main__":
    key = jax.random.PRNGKey(0)

    # ---- test 1: exact spec shapes, f32 (direct-accumulate path) ---------------
    in_features, hidden_features, batch = 5, 32, 8
    k_p, k_x, key = jax.random.split(key, 3)
    w_enc, b_enc, w_dec, b_dec = _init_params(k_p, in_features, hidden_features)
    x = jax.random.normal(k_x, (batch, in_features), jnp.float32)

    params = prepare_sae_params(w_enc, b_enc, w_dec, b_dec)
    encoded, decoded = sae_forward(x, params)
    jax.block_until_ready((encoded, decoded))

    enc_ref = x @ w_enc + b_enc
    dec_ref = enc_ref @ w_dec + b_dec
    assert encoded.shape == (batch, hidden_features)
    assert decoded.shape == (batch, in_features)
    assert jnp.allclose(encoded, enc_ref, atol=1e-5, rtol=1e-5)
    assert jnp.allclose(decoded, dec_ref, atol=1e-5, rtol=1e-5)

    # ---- test 2: padded batch/hidden + multiple hidden tiles (f32) -------------
    in2, hid2, b2 = 5, 300, 40
    k_p2, k_x2, key = jax.random.split(key, 3)
    w_enc2, b_enc2, w_dec2, b_dec2 = _init_params(k_p2, in2, hid2)
    x2 = jax.random.normal(k_x2, (b2, in2), jnp.float32)
    params2 = prepare_sae_params(w_enc2, b_enc2, w_dec2, b_dec2)
    enc2, dec2 = sae_forward(x2, params2, max_hidden_tile=128)  # forces 3 hidden steps
    jax.block_until_ready((enc2, dec2))
    enc2_ref = x2 @ w_enc2 + b_enc2
    dec2_ref = enc2_ref @ w_dec2 + b_dec2
    assert jnp.allclose(enc2, enc2_ref, atol=1e-5, rtol=1e-5)
    assert jnp.allclose(dec2, dec2_ref, atol=1e-5, rtol=1e-5)

    # ---- test 3: bf16 inputs/weights (f32 scratch-accumulator path) ------------
    k_p3, k_x3, key = jax.random.split(key, 3)
    w_enc3, b_enc3, w_dec3, b_dec3 = _init_params(k_p3, in2, hid2, dtype=jnp.bfloat16)
    x3 = jax.random.normal(k_x3, (16, in2), jnp.float32).astype(jnp.bfloat16)
    params3 = prepare_sae_params(w_enc3, b_enc3, w_dec3, b_dec3)
    enc3, dec3 = sae_forward(x3, params3, max_hidden_tile=128)
    jax.block_until_ready((enc3, dec3))
    enc3_ref = x3.astype(jnp.float32) @ w_enc3.astype(jnp.float32) + b_enc3.astype(jnp.float32)
    dec3_ref = enc3_ref @ w_dec3.astype(jnp.float32) + b_dec3.astype(jnp.float32)
    assert jnp.allclose(enc3.astype(jnp.float32), enc3_ref, atol=5e-2, rtol=5e-2)
    assert jnp.allclose(dec3.astype(jnp.float32), dec3_ref, atol=5e-2, rtol=5e-2)

    print("KERNEL_OK")
</pallas_src>

<mosaic_0001>
module attributes {stable_mosaic.version = 11 : i64} {
  func.func @_sae_kernel(%arg0: i32, %arg1: i32, %arg2: memref<8x128xf32, #tpu.memory_space<vmem>>, %arg3: memref<128x128xf32, #tpu.memory_space<vmem>>, %arg4: memref<1x128xf32, #tpu.memory_space<vmem>>, %arg5: memref<128x128xf32, #tpu.memory_space<vmem>>, %arg6: memref<1x128xf32, #tpu.memory_space<vmem>>, %arg7: memref<8x128xf32, #tpu.memory_space<vmem>>, %arg8: memref<8x128xf32, #tpu.memory_space<vmem>>) attributes {dimension_semantics = [#tpu.dimension_semantics<parallel>, #tpu.dimension_semantics<arbitrary>], iteration_bounds = array<i64: 1, 1>, scalar_prefetch = 0 : i64, scratch_operands = 0 : i64, tpu.core_type = #tpu.core_type<tc>, window_params = [{transform_indices = @transform_0, window_bounds = array<i64: 8, 128>}, {transform_indices = @transform_1, window_bounds = array<i64: 128, 128>}, {transform_indices = @transform_2, window_bounds = array<i64: 1, 128>}, {transform_indices = @transform_3, window_bounds = array<i64: 128, 128>}, {pipeline_mode = #tpu.pipeline_mode<synchronous>, transform_indices = @transform_4, window_bounds = array<i64: 1, 128>}, {transform_indices = @transform_5, window_bounds = array<i64: 8, 128>}, {transform_indices = @transform_6, window_bounds = array<i64: 8, 128>}]} {
    %c0 = arith.constant 0 : index
    %c0_0 = arith.constant 0 : index
    %0 = vector.load %arg2[%c0, %c0_0] : memref<8x128xf32, #tpu.memory_space<vmem>>, vector<8x128xf32>
    %c0_1 = arith.constant 0 : index
    %c0_2 = arith.constant 0 : index
    %1 = vector.load %arg3[%c0_1, %c0_2] : memref<128x128xf32, #tpu.memory_space<vmem>>, vector<128x128xf32>
    %cst = arith.constant dense<0.000000e+00> : vector<8x128xf32>
    %2 = tpu.matmul %0, %1, %cst {dimension_numbers = #tpu.dot_dimension_numbers<[1], [0], [0], [1], [0, 0, 1, 1], [], []>} : vector<8x128xf32>, vector<128x128xf32>, vector<8x128xf32> -> vector<8x128xf32>
    %c0_3 = arith.constant 0 : index
    %c0_4 = arith.constant 0 : index
    %3 = vector.load %arg4[%c0_3, %c0_4] : memref<1x128xf32, #tpu.memory_space<vmem>>, vector<1x128xf32>
    %4 = vector.broadcast %3 : vector<1x128xf32> to vector<8x128xf32>
    %5 = arith.addf %2, %4 : vector<8x128xf32>
    %c0_5 = arith.constant 0 : index
    %c0_6 = arith.constant 0 : index
    %6 = vector.load %arg7[%c0_5, %c0_6] : memref<8x128xf32, #tpu.memory_space<vmem>>, vector<8x128xf32>
    tpu.vector_store %arg7[%c0_5, %c0_6], %5 {strides = array<i32>} : memref<8x128xf32, #tpu.memory_space<vmem>>, vector<8x128xf32>,
    %c0_7 = arith.constant 0 : index
    %c0_8 = arith.constant 0 : index
    %7 = vector.load %arg5[%c0_7, %c0_8] : memref<128x128xf32, #tpu.memory_space<vmem>>, vector<128x128xf32>
    %cst_9 = arith.constant dense<0.000000e+00> : vector<8x128xf32>
    %8 = tpu.matmul %5, %7, %cst_9 {dimension_numbers = #tpu.dot_dimension_numbers<[1], [0], [0], [1], [0, 0, 1, 1], [], []>} : vector<8x128xf32>, vector<128x128xf32>, vector<8x128xf32> -> vector<8x128xf32>
    %c0_i32 = arith.constant 0 : i32
    %9 = arith.cmpi eq, %arg1, %c0_i32 : i32
    %10 = arith.extui %9 : i1 to i32
    %c0_i32_10 = arith.constant 0 : i32
    %11 = arith.cmpi ne, %10, %c0_i32_10 : i32
    scf.if %11 {
      %c0_13 = arith.constant 0 : index
      %c0_14 = arith.constant 0 : index
      %15 = vector.load %arg6[%c0_13, %c0_14] : memref<1x128xf32, #tpu.memory_space<vmem>>, vector<1x128xf32>
      %16 = vector.broadcast %15 : vector<1x128xf32> to vector<8x128xf32>
      %17 = arith.addf %16, %8 : vector<8x128xf32>
      %c0_15 = arith.constant 0 : index
      %c0_16 = arith.constant 0 : index
      %18 = vector.load %arg8[%c0_15, %c0_16] : memref<8x128xf32, #tpu.memory_space<vmem>>, vector<8x128xf32>
      tpu.vector_store %arg8[%c0_15, %c0_16], %17 {strides = array<i32>} : memref<8x128xf32, #tpu.memory_space<vmem>>, vector<8x128xf32>,
    } else {
    }
    %c0_i32_11 = arith.constant 0 : i32
    %12 = arith.cmpi ne, %arg1, %c0_i32_11 : i32
    %13 = arith.extui %12 : i1 to i32
    %c0_i32_12 = arith.constant 0 : i32
    %14 = arith.cmpi ne, %13, %c0_i32_12 : i32
    scf.if %14 {
      %c0_13 = arith.constant 0 : index
      %c0_14 = arith.constant 0 : index
      %15 = vector.load %arg8[%c0_13, %c0_14] : memref<8x128xf32, #tpu.memory_space<vmem>>, vector<8x128xf32>
      %16 = arith.addf %15, %8 : vector<8x128xf32>
      %c0_15 = arith.constant 0 : index
      %c0_16 = arith.constant 0 : index
      %17 = vector.load %arg8[%c0_15, %c0_16] : memref<8x128xf32, #tpu.memory_space<vmem>>, vector<8x128xf32>
      tpu.vector_store %arg8[%c0_15, %c0_16], %16 {strides = array<i32>} : memref<8x128xf32, #tpu.memory_space<vmem>>, vector<8x128xf32>,
    } else {
    }
    return
  }
  func.func @transform_0(%arg0: i32, %arg1: i32) -> (i32, i32) {
    %c0_i32 = arith.constant 0 : i32
    %c0_i32_0 = arith.constant 0 : i32
    return %arg0, %c0_i32 : i32, i32
  }
  func.func @transform_1(%arg0: i32, %arg1: i32) -> (i32, i32) {
    %c0_i32 = arith.constant 0 : i32
    %c0_i32_0 = arith.constant 0 : i32
    return %c0_i32, %arg1 : i32, i32
  }
  func.func @transform_2(%arg0: i32, %arg1: i32) -> (i32, i32) {
    %c0_i32 = arith.constant 0 : i32
    %c0_i32_0 = arith.constant 0 : i32
    return %c0_i32, %arg1 : i32, i32
  }
  func.func @transform_3(%arg0: i32, %arg1: i32) -> (i32, i32) {
    %c0_i32 = arith.constant 0 : i32
    %c0_i32_0 = arith.constant 0 : i32
    return %arg1, %c0_i32 : i32, i32
  }
  func.func @transform_4(%arg0: i32, %arg1: i32) -> (i32, i32) {
    %c0_i32 = arith.constant 0 : i32
    %c0_i32_0 = arith.constant 0 : i32
    %c0_i32_1 = arith.constant 0 : i32
    return %c0_i32, %c0_i32_0 : i32, i32
  }
  func.func @transform_5(%arg0: i32, %arg1: i32) -> (i32, i32) {
    %c0_i32 = arith.constant 0 : i32
    return %arg0, %arg1 : i32, i32
  }
  func.func @transform_6(%arg0: i32, %arg1: i32) -> (i32, i32) {
    %c0_i32 = arith.constant 0 : i32
    %c0_i32_0 = arith.constant 0 : i32
    return %arg0, %c0_i32 : i32, i32
  }
}

</mosaic_0001>

<llo_original>
// kernel: tpu_custom_call.1
$region0: #{tpu_custom_call.1}
  #allocation0 [shape = 'u32[]', space=smem, size = 0x4, offset = 0x4, fixed_abs, tag = 'smem constant byte address 0x4 - core index']
  #allocation1 [shape = 'u32[144,128]{1,0:T(1,128)}', space=vmem, size = 0x12000, scoped, tag = 'internal scratch']
  %s0 = inlined_call_operand.hbm [shape: f32[8,128], index: 0, kind: input, shape index: {}]
  %s1 = inlined_call_operand.hbm [shape: f32[128,128], index: 1, kind: input, shape index: {}]
  %s2 = inlined_call_operand.vmem [shape: f32[1,128], index: 2, kind: input, shape index: {}]
  %s3 = inlined_call_operand.hbm [shape: f32[128,128], index: 3, kind: input, shape index: {}]
  %s4 = inlined_call_operand.vmem [shape: f32[1,128], index: 4, kind: input, shape index: {}]
  %s5 = inlined_call_operand.hbm [shape: f32[8,128], index: 5, kind: output, shape index: {0}]
  %s6 = inlined_call_operand.hbm [shape: f32[8,128], index: 6, kind: output, shape index: {1}]
  %7 = xla_tuple %s5, %s6
  %s8 = sld [smem:[#allocation0]]
  $region58: #{tpu_custom_call.1} parent=0
    _
  %s10 = ssub.s32 1, %s8
  %s11 = scalar_select 0, %s10, %s8
  $region1: #{tpu_custom_call.1} parent=0
    #allocation2 [shape = 'u8[4096]{0}', space=vmem, size = 0x1000, scoped, tag = 'input window, operand 0, single buffered']
    #allocation3 [shape = 's32[1]{0}', space=sflag, size = 0x4, scoped, tag = 'scoped memory for tpu_custom_call.1']
    #allocation4 [shape = 's32[1]{0}', space=sflag, size = 0x4, scoped, tag = 'scoped memory for tpu_custom_call.1']
    #allocation5 [shape = 'u8[65536]{0}', space=vmem, size = 0x10000, scoped, tag = 'input window, operand 1, single buffered']
    #allocation6 [shape = 's32[1]{0}', space=sflag, size = 0x4, scoped, tag = 'scoped memory for tpu_custom_call.1']
    #allocation7 [shape = 'u8[65536]{0}', space=vmem, size = 0x10000, scoped, tag = 'input window, operand 3, single buffered']
    #allocation8 [shape = 'u8[4096]{0}', space=vmem, size = 0x1000, scoped, tag = 'output window, operand 0, single buffered']
    #allocation9 [shape = 'u8[4096]{0}', space=vmem, size = 0x1000, scoped, tag = 'output window, operand 1, single buffered']
    #allocation10 [shape = 's32[1]{0}', space=sflag, size = 0x4, scoped, tag = 'scoped memory for tpu_custom_call.1']
    %12 = vsyncpa [#allocation3], 0
    %13 = vsyncpa [#allocation6], 0
    %14 = vsyncpa [#allocation4], 0
    %15 = vsyncpa [#allocation10], 0
    // Predicated region
    $region2: #{tpu_custom_call.1} parent=1 // pred_check
      _
    $region3: #{tpu_custom_call.1} parent=1 // pred_check_branch
      %17 = sbr.rel (0) target = $region5
    $region4: #{tpu_custom_call.1} parent=1 // pred_region
      %s19 = ssub.s32 128, 128
      %20 = vsyncadd [#allocation3], %s19
      %s22 = sshll.u32 [#allocation2], 4
      %s23 = int_to_ptr.vmem [resolvable:$true] %s22
      %25 = dma.hbm_to_vmem [thread:$0]  %s0, 128, %s23, [#allocation3]
    $region5: #{tpu_custom_call.1} parent=1 // pred_fallthru
      _
    // Predicated region
    $region6: #{tpu_custom_call.1} parent=1 // pred_check
      _
    $region7: #{tpu_custom_call.1} parent=1 // pred_check_branch
      %27 = sbr.rel (0) target = $region9
    $region8: #{tpu_custom_call.1} parent=1 // pred_region
      %s29 = ssub.s32 2048, 2048
      %30 = vsyncadd [#allocation6], %s29
      %s31 = sshll.u32 [#allocation5], 4
      %s32 = int_to_ptr.vmem [resolvable:$true] %s31
      %37 = dma.hbm_to_vmem [thread:$0]  %s1, 2048, %s32, [#allocation6], 128, 128, 8
    $region9: #{tpu_custom_call.1} parent=1 // pred_fallthru
      _
    // Predicated region
    $region10: #{tpu_custom_call.1} parent=1 // pred_check
      _
    $region11: #{tpu_custom_call.1} parent=1 // pred_check_branch
      %39 = sbr.rel (0) target = $region13
    $region12: #{tpu_custom_call.1} parent=1 // pred_region
      _
    $region13: #{tpu_custom_call.1} parent=1 // pred_fallthru
      _
    // Predicated region
    $region14: #{tpu_custom_call.1} parent=1 // pred_check
      _
    $region15: #{tpu_custom_call.1} parent=1 // pred_check_branch
      %41 = sbr.rel (0) target = $region17
    $region16: #{tpu_custom_call.1} parent=1 // pred_region
      %s43 = ssub.s32 2048, 2048
      %44 = vsyncadd [#allocation6], %s43
      %s45 = sshll.u32 [#allocation7], 4
      %s46 = int_to_ptr.vmem [resolvable:$true] %s45
      %51 = dma.hbm_to_vmem [thread:$0]  %s3, 2048, %s46, [#allocation6], 128, 128, 8
    $region17: #{tpu_custom_call.1} parent=1 // pred_fallthru
      _
    // Predicated region
    $region18: #{tpu_custom_call.1} parent=1 // pred_check
      _
    $region19: #{tpu_custom_call.1} parent=1 // pred_check_branch
      %53 = sbr.rel (0) target = $region21
    $region20: #{tpu_custom_call.1} parent=1 // pred_region
      _
    $region21: #{tpu_custom_call.1} parent=1 // pred_fallthru
      _
    // Predicated region
    $region22: #{tpu_custom_call.1} parent=1 // pred_check
      _
    $region23: #{tpu_custom_call.1} parent=1 // pred_check_branch
      %55 = sbr.rel (0) target = $region25
    $region24: #{tpu_custom_call.1} parent=1 // pred_region
      %56 = dma.done [#allocation3], 128
    $region25: #{tpu_custom_call.1} parent=1 // pred_fallthru
      _
    // Predicated region
    $region26: #{tpu_custom_call.1} parent=1 // pred_check
      _
    $region27: #{tpu_custom_call.1} parent=1 // pred_check_branch
      %58 = sbr.rel (0) target = $region29
    $region28: #{tpu_custom_call.1} parent=1 // pred_region
      %59 = dma.done [#allocation6], 2048
    $region29: #{tpu_custom_call.1} parent=1 // pred_fallthru
      _
    // Predicated region
    $region30: #{tpu_custom_call.1} parent=1 // pred_check
      _
    $region31: #{tpu_custom_call.1} parent=1 // pred_check_branch
      %61 = sbr.rel (0) target = $region33
    $region32: #{tpu_custom_call.1} parent=1 // pred_region
      %62 = dma.done [#allocation6], 2048
    $region33: #{tpu_custom_call.1} parent=1 // pred_fallthru
      _
    %v63 = vld [vmem:[#allocation2] sm:$0xff]
    %v64 = vld [vmem:[#allocation5] sm:$0xff]
    %v65 = vld [vmem:[#allocation5 + $0x8] sm:$0xff]
    %v66 = vld [vmem:[#allocation5 + $0x10] sm:$0xff]
    %v67 = vld [vmem:[#allocation5 + $0x18] sm:$0xff]
    %v68 = vld [vmem:[#allocation5 + $0x20] sm:$0xff]
    %v69 = vld [vmem:[#allocation5 + $0x28] sm:$0xff]
    %v70 = vld [vmem:[#allocation5 + $0x30] sm:$0xff]
    %v71 = vld [vmem:[#allocation5 + $0x38] sm:$0xff]
    %v72 = vld [vmem:[#allocation5 + $0x40] sm:$0xff]
    %v73 = vld [vmem:[#allocation5 + $0x48] sm:$0xff]
    %v74 = vld [vmem:[#allocation5 + $0x50] sm:$0xff]
    %v75 = vld [vmem:[#allocation5 + $0x58] sm:$0xff]
    %v76 = vld [vmem:[#allocation5 + $0x60] sm:$0xff]
    %v77 = vld [vmem:[#allocation5 + $0x68] sm:$0xff]
    %v78 = vld [vmem:[#allocation5 + $0x70] sm:$0xff]
    %v79 = vld [vmem:[#allocation5 + $0x78] sm:$0xff]
    %v80 = vld [vmem:[%s2] sm:$0x1]
    %v82 = vlaneseq
    %v83 = vshrl.u32 %v82, 7
    %v84 = vsub.s32 0, %v83
    %v85 = vrot.slane %v80, %v84
    %87 = vmatprep.subr.mxu0 0.0
    %88 = vmatpush1.msra.mxu0 %v79
    %89 = vmatprep.subr.mxu0 0.0
    %90 = vmatpush1.msra.mxu0 %v78
    %91 = vmatprep.subr.mxu0 0.0
    %92 = vmatpush1.msra.mxu0 %v77
    %93 = vmatprep.subr.mxu0 0.0
    %94 = vmatpush1.msra.mxu0 %v76
    %95 = vmatprep.subr.mxu0 0.0
    %96 = vmatpush1.msra.mxu0 %v75
    %97 = vmatprep.subr.mxu0 0.0
    %98 = vmatpush1.msra.mxu0 %v74
    %99 = vmatprep.subr.mxu0 0.0
    %100 = vmatpush1.msra.mxu0 %v73
    %101 = vmatprep.subr.mxu0 0.0
    %102 = vmatpush1.msra.mxu0 %v72
    %103 = vmatprep.subr.mxu0 0.0
    %104 = vmatpush1.msra.mxu0 %v71
    %105 = vmatprep.subr.mxu0 0.0
    %106 = vmatpush1.msra.mxu0 %v70
    %107 = vmatprep.subr.mxu0 0.0
    %108 = vmatpush1.msra.mxu0 %v69
    %109 = vmatprep.subr.mxu0 0.0
    %110 = vmatpush1.msra.mxu0 %v68
    %111 = vmatprep.subr.mxu0 0.0
    %112 = vmatpush1.msra.mxu0 %v67
    %113 = vmatprep.subr.mxu0 0.0
    %114 = vmatpush1.msra.mxu0 %v66
    %115 = vmatprep.subr.mxu0 0.0
    %116 = vmatpush1.msra.mxu0 %v65
    %117 = vmatprep.subr.mxu0 0.0
    %118 = vmatpush1.msra.mxu0 %v64
    %119 = vmatprep.subr.mxu0 0.0
    %120 = vmatpush2.msra.mxu0 0.0
    %121 = vmatprep.subr.mxu0 0.0
    %122 = vmatpush2.msra.mxu0 0.0
    %123 = vmatprep.subr.mxu0 0.0
    %124 = vmatpush2.msra.mxu0 0.0
    %125 = vmatprep.subr.mxu0 0.0
    %126 = vmatpush2.msra.mxu0 0.0
    %127 = vmatprep.subr.mxu0 0.0
    %128 = vmatpush2.msra.mxu0 0.0
    %129 = vmatprep.subr.mxu0 0.0
    %130 = vmatpush2.msra.mxu0 0.0
    %131 = vmatprep.subr.mxu0 0.0
    %132 = vmatpush2.msra.mxu0 0.0
    %133 = vmatprep.subr.mxu0 0.0
    %134 = vmatpush2.msra.mxu0 0.0
    %135 = vmatprep.subr.mxu0 0.0
    %136 = vmatpush2.msra.mxu0 0.0
    %137 = vmatprep.subr.mxu0 0.0
    %138 = vmatpush2.msra.mxu0 0.0
    %139 = vmatprep.subr.mxu0 0.0
    %140 = vmatpush2.msra.mxu0 0.0
    %141 = vmatprep.subr.mxu0 0.0
    %142 = vmatpush2.msra.mxu0 0.0
    %143 = vmatprep.subr.mxu0 0.0
    %144 = vmatpush2.msra.mxu0 0.0
    %145 = vmatprep.subr.mxu0 0.0
    %146 = vmatpush2.msra.mxu0 0.0
    %147 = vmatprep.subr.mxu0 0.0
    %148 = vmatpush2.msra.mxu0 0.0
    %149 = vmatprep.subr.mxu0 0.0
    %150 = vmatpush2.msra.mxu0 0.0
    %151 = vmatprep.mubr.f32.mxu0 0.0
    %152 = vmatmul.mubr.f32.gmra.mxu0 %v63
    %v153 = vpop.f32.mrf.mxu0
    %v154 = vadd.f32 %v85, %v153
    %v155 = vpop.f32.mrf.mxu0
    %156 = vdwg.mxu0
    %157 = vst [vmem:[#allocation8] sm:$0xff] %v154
    %v158 = vld [vmem:[#allocation7] sm:$0xff]
    %v159 = vld [vmem:[#allocation7 + $0x8] sm:$0xff]
    %v160 = vld [vmem:[#allocation7 + $0x10] sm:$0xff]
    %v161 = vld [vmem:[#allocation7 + $0x18] sm:$0xff]
    %v162 = vld [vmem:[#allocation7 + $0x20] sm:$0xff]
    %v163 = vld [vmem:[#allocation7 + $0x28] sm:$0xff]
    %v164 = vld [vmem:[#allocation7 + $0x30] sm:$0xff]
    %v165 = vld [vmem:[#allocation7 + $0x38] sm:$0xff]
    %v166 = vld [vmem:[#allocation7 + $0x40] sm:$0xff]
    %v167 = vld [vmem:[#allocation7 + $0x48] sm:$0xff]
    %v168 = vld [vmem:[#allocation7 + $0x50] sm:$0xff]
    %v169 = vld [vmem:[#allocation7 + $0x58] sm:$0xff]
    %v170 = vld [vmem:[#allocation7 + $0x60] sm:$0xff]
    %v171 = vld [vmem:[#allocation7 + $0x68] sm:$0xff]
    %v172 = vld [vmem:[#allocation7 + $0x70] sm:$0xff]
    %v173 = vld [vmem:[#allocation7 + $0x78] sm:$0xff]
    %174 = vmatprep.subr.mxu0 0.0
    %175 = vmatpush1.msra.mxu0 %v173
    %176 = vmatprep.subr.mxu0 0.0
    %177 = vmatpush1.msra.mxu0 %v172
    %178 = vmatprep.subr.mxu0 0.0
    %179 = vmatpush1.msra.mxu0 %v171
    %180 = vmatprep.subr.mxu0 0.0
    %181 = vmatpush1.msra.mxu0 %v170
    %182 = vmatprep.subr.mxu0 0.0
    %183 = vmatpush1.msra.mxu0 %v169
    %184 = vmatprep.subr.mxu0 0.0
    %185 = vmatpush1.msra.mxu0 %v168
    %186 = vmatprep.subr.mxu0 0.0
    %187 = vmatpush1.msra.mxu0 %v167
    %188 = vmatprep.subr.mxu0 0.0
    %189 = vmatpush1.msra.mxu0 %v166
    %190 = vmatprep.subr.mxu0 0.0
    %191 = vmatpush1.msra.mxu0 %v165
    %192 = vmatprep.subr.mxu0 0.0
    %193 = vmatpush1.msra.mxu0 %v164
    %194 = vmatprep.subr.mxu0 0.0
    %195 = vmatpush1.msra.mxu0 %v163
    %196 = vmatprep.subr.mxu0 0.0
    %197 = vmatpush1.msra.mxu0 %v162
    %198 = vmatprep.subr.mxu0 0.0
    %199 = vmatpush1.msra.mxu0 %v161
    %200 = vmatprep.subr.mxu0 0.0
    %201 = vmatpush1.msra.mxu0 %v160
    %202 = vmatprep.subr.mxu0 0.0
    %203 = vmatpush1.msra.mxu0 %v159
    %204 = vmatprep.subr.mxu0 0.0
    %205 = vmatpush1.msra.mxu0 %v158
    %206 = vmatprep.subr.mxu0 0.0
    %207 = vmatpush2.msra.mxu0 0.0
    %208 = vmatprep.subr.mxu0 0.0
    %209 = vmatpush2.msra.mxu0 0.0
    %210 = vmatprep.subr.mxu0 0.0
    %211 = vmatpush2.msra.mxu0 0.0
    %212 = vmatprep.subr.mxu0 0.0
    %213 = vmatpush2.msra.mxu0 0.0
    %214 = vmatprep.subr.mxu0 0.0
    %215 = vmatpush2.msra.mxu0 0.0
    %216 = vmatprep.subr.mxu0 0.0
    %217 = vmatpush2.msra.mxu0 0.0
    %218 = vmatprep.subr.mxu0 0.0
    %219 = vmatpush2.msra.mxu0 0.0
    %220 = vmatprep.subr.mxu0 0.0
    %221 = vmatpush2.msra.mxu0 0.0
    %222 = vmatprep.subr.mxu0 0.0
    %223 = vmatpush2.msra.mxu0 0.0
    %224 = vmatprep.subr.mxu0 0.0
    %225 = vmatpush2.msra.mxu0 0.0
    %226 = vmatprep.subr.mxu0 0.0
    %227 = vmatpush2.msra.mxu0 0.0
    %228 = vmatprep.subr.mxu0 0.0
    %229 = vmatpush2.msra.mxu0 0.0
    %230 = vmatprep.subr.mxu0 0.0
    %231 = vmatpush2.msra.mxu0 0.0
    %232 = vmatprep.subr.mxu0 0.0
    %233 = vmatpush2.msra.mxu0 0.0
    %234 = vmatprep.subr.mxu0 0.0
    %235 = vmatpush2.msra.mxu0 0.0
    %236 = vmatprep.subr.mxu0 0.0
    %237 = vmatpush2.msra.mxu0 0.0
    %238 = vmatprep.mubr.f32.mxu0 0.0
    %239 = vmatmul.mubr.f32.gmra.mxu0 %v154
    %v240 = vpop.f32.mrf.mxu0
    %v241 = vadd.f32 0.0, %v240
    %v242 = vpop.f32.mrf.mxu0
    %243 = vdwg.mxu0
    %p244 = scmp.eq.s32.totalorder 0, 0
    // Predicated region
    $region34: #{tpu_custom_call.1} parent=1 // pred_check
      %p245 = pneg %p244
    $region35: #{tpu_custom_call.1} parent=1 // pred_check_branch
      %247 = sbr.rel (%p245) target = $region37
    $region36: #{tpu_custom_call.1} parent=1 // pred_region
      %v248 = vld [vmem:[%s4] sm:$0x1]
      %v250 = vlaneseq
      %v251 = vshrl.u32 %v250, 7
      %v252 = vsub.s32 0, %v251
      %v253 = vrot.slane %v248, %v252
      %v255 = vadd.f32 %v253, %v241
      %256 = vst [vmem:[#allocation9] sm:$0xff] %v255
    $region37: #{tpu_custom_call.1} parent=1 // pred_fallthru
      _
    %p257 = scmp.ne.s32.totalorder 0, 0
    // Predicated region
    $region38: #{tpu_custom_call.1} parent=1 // pred_check
      %p258 = pneg %p257
    $region39: #{tpu_custom_call.1} parent=1 // pred_check_branch
      %260 = sbr.rel (%p258) target = $region41
    $region40: #{tpu_custom_call.1} parent=1 // pred_region
      %v261 = vld [vmem:[#allocation9] sm:$0xff]
      %v262 = vadd.f32 %v261, %v241
      %263 = vst [vmem:[#allocation9] sm:$0xff] %v262
    $region41: #{tpu_custom_call.1} parent=1 // pred_fallthru
      _
    // Predicated region
    $region42: #{tpu_custom_call.1} parent=1 // pred_check
      _
    $region43: #{tpu_custom_call.1} parent=1 // pred_check_branch
      %265 = sbr.rel (0) target = $region45
    $region44: #{tpu_custom_call.1} parent=1 // pred_region
      %s267 = ssub.s32 128, 128
      %268 = vsyncadd [#allocation4], %s267
      %s270 = sshll.u32 [#allocation8], 4
      %s271 = int_to_ptr.vmem [resolvable:$true] %s270
      %273 = dma.vmem_to_hbm [thread:$0]  %s271, 128, %s5, [#allocation4]
    $region45: #{tpu_custom_call.1} parent=1 // pred_fallthru
      _
    // Predicated region
    $region46: #{tpu_custom_call.1} parent=1 // pred_check
      _
    $region47: #{tpu_custom_call.1} parent=1 // pred_check_branch
      %275 = sbr.rel (0) target = $region49
    $region48: #{tpu_custom_call.1} parent=1 // pred_region
      %s277 = ssub.s32 128, 128
      %278 = vsyncadd [#allocation10], %s277
      %s280 = sshll.u32 [#allocation9], 4
      %s281 = int_to_ptr.vmem [resolvable:$true] %s280
      %283 = dma.vmem_to_hbm [thread:$0]  %s281, 128, %s6, [#allocation10]
    $region49: #{tpu_custom_call.1} parent=1 // pred_fallthru
      _
    // Predicated region
    $region50: #{tpu_custom_call.1} parent=1 // pred_check
      _
    $region51: #{tpu_custom_call.1} parent=1 // pred_check_branch
      %285 = sbr.rel (0) target = $region53
    $region52: #{tpu_custom_call.1} parent=1 // pred_region
      %286 = dma.done [#allocation4], 128
    $region53: #{tpu_custom_call.1} parent=1 // pred_fallthru
      _
    // Predicated region
    $region54: #{tpu_custom_call.1} parent=1 // pred_check
      _
    $region55: #{tpu_custom_call.1} parent=1 // pred_check_branch
      %288 = sbr.rel (0) target = $region57
    $region56: #{tpu_custom_call.1} parent=1 // pred_region
      %289 = dma.done [#allocation10], 128
    $region57: #{tpu_custom_call.1} parent=1 // pred_fallthru
      _
    %290 = vsyncpa [#allocation3], 1
    %291 = vsyncpa [#allocation6], 1
    %292 = vsyncpa [#allocation4], 1
    %293 = vsyncpa [#allocation10], 1

</llo_original>
